<compile_context>
chip_gen: v5e
topology: v5e:2x2
jax: 0.10.0
libtpu: 0.0.40
codegen_flags: <defaults>
</compile_context>

<pallas_src>
import functools
import math

import jax
import jax.numpy as jnp
from jax.experimental import pallas as pl
from jax.experimental.pallas import tpu as pltpu


def _pick_seq_tile(s, batch):
    # Largest convenient tile that divides S; falls back to full S for tiny /
    # odd sequence lengths (keeps all block shapes legal).
    # TODO(synk): for large S with S % 128 != 0, switch to pl.cdiv grids with
    # in-kernel tail masking instead of the quadratic full-S fallback.
    t = s
    for cand in (512, 256, 128):
        if s % cand == 0:
            t = cand
            break
    # Guarantee >=2 parallel (b, qi) programs so v7x's two TensorCores are fed.
    if batch * (s // t) < 2 and t % 256 == 0:
        t //= 2
    return t


def _default_vmem_limit():
    # ~3/4 of physical VMEM: ~96 MiB on v5e/v6e (128 MiB), ~48 MiB on v7x (64 MiB).
    try:
        cap = int(pltpu.get_tpu_info().vmem_capacity_bytes)
    except Exception:
        cap = 128 * 1024 * 1024
    return int(min(cap * 3 // 4, 96 * 1024 * 1024))


def _layernorm(x, a, b, eps):
    # torch.mean / torch.std(dim=-1): unbiased (N-1) std; eps added to std.
    # Exact reciprocal: LayerNorm is the numerically sensitive path.
    mean = jnp.mean(x, axis=-1, keepdims=True)
    cen = x - mean
    var = jnp.sum(cen * cen, axis=-1, keepdims=True) * (1.0 / (x.shape[-1] - 1))
    return a * cen / (jnp.sqrt(var) + eps) + b


# ---------------------- kernel 1: LN1 + fused QKV ----------------------------
def _qkv_kernel(x_ref, wqkv_ref, bqkv_ref, ln1a_ref, ln1b_ref,
                q_ref, k_ref, v_ref, *, num_heads, eps):
    x = x_ref[0].astype(jnp.float32)                       # [TR, D]
    D = x.shape[-1]
    scale = 1.0 / math.sqrt(D // num_heads)

    xn = _layernorm(x, ln1a_ref[...], ln1b_ref[...], eps).astype(wqkv_ref.dtype)

    # One MXU pass with N = 3D instead of three small matmuls.
    qkv = jnp.dot(xn, wqkv_ref[...],
                  preferred_element_type=jnp.float32) + bqkv_ref[...]  # [TR, 3D]

    # Lane-dense [B, S, D] outputs (aligned static lane slices -> unmasked
    # stores); 1/sqrt(Dh) folded into q once instead of scaling [S,S] scores.
    q_ref[0] = (qkv[:, 0 * D:1 * D] * scale).astype(q_ref.dtype)
    k_ref[0] = qkv[:, 1 * D:2 * D].astype(k_ref.dtype)
    v_ref[0] = qkv[:, 2 * D:3 * D].astype(v_ref.dtype)


# ------------- kernel 2: flash attention + out-proj + LN2 + FFN --------------
def _attn_ffn_kernel(x_ref, q_ref, k_ref, v_ref, mask_ref,
                     wo_ref, bo_ref, w1_ref, b1_ref, w2_ref, b2_ref,
                     ln2a_ref, ln2b_ref,
                     o_ref,
                     m_scr, l_scr, acc_scr,
                     *, num_heads, eps, approx):
    ki = pl.program_id(2)
    nk = pl.num_programs(2)

    @pl.when(ki == 0)
    def _():
        m_scr[...] = jnp.full(m_scr.shape, -jnp.inf, dtype=m_scr.dtype)
        l_scr[...] = jnp.zeros(l_scr.shape, dtype=l_scr.dtype)
        acc_scr[...] = jnp.zeros(acc_scr.shape, dtype=acc_scr.dtype)

    q = q_ref[0]                                           # [TQ, D] (pre-scaled)
    k = k_ref[0]                                           # [TK, D]
    v = v_ref[0]                                           # [TK, D]
    D = q.shape[-1]
    Dh = D // num_heads

    # Mask predicate once per (q,k) block, shared by every head (int8 in HBM).
    masked = mask_ref[0] == 0                              # [TQ, TK] bool

    # Head split happens here (once per block) from the lane-dense q/k/v.
    # Contraction over the last dim of both operands -> no transpose needed.
    dn = (((1,), (1,)), ((), ()))
    s_list = []
    for h in range(num_heads):
        sl = slice(h * Dh, (h + 1) * Dh)
        s_h = jax.lax.dot_general(q[:, sl], k[:, sl], dn,
                                  preferred_element_type=jnp.float32)
        s_list.append(jnp.where(masked, -1e9, s_h))        # match torch masked_fill
    s = jnp.stack(s_list, axis=0)                          # [H, TQ, TK] f32

    # Online (flash) softmax across the k grid axis.
    m_prev = m_scr[...]                                    # [H, TQ, 1]
    m_new = jnp.maximum(m_prev, jnp.max(s, axis=-1, keepdims=True))
    alpha = jnp.exp(m_prev - m_new)
    p = jnp.exp(s - m_new)
    l_scr[...] = alpha * l_scr[...] + jnp.sum(p, axis=-1, keepdims=True)
    pv = jnp.stack(
        [jnp.dot(p[h].astype(v.dtype), v[:, h * Dh:(h + 1) * Dh],
                 preferred_element_type=jnp.float32)
         for h in range(num_heads)], axis=0)               # [H, TQ, Dh]
    acc_scr[...] = alpha * acc_scr[...] + pv
    m_scr[...] = m_new

    @pl.when(ki == nk - 1)
    def _():
        x = x_ref[0].astype(jnp.float32)                   # [TQ, D]

        # Normalize (EUP approx reciprocal only here), concatenate heads back
        # to lane-dense [TQ, D], then ONE full-depth (K = D) output projection
        # instead of H Dh-deep matmuls.
        attn = acc_scr[...] * pl.reciprocal(l_scr[...], approx=approx)
        attn_cat = jnp.concatenate([attn[h] for h in range(num_heads)], axis=-1)
        proj = jnp.dot(attn_cat.astype(wo_ref.dtype), wo_ref[...],
                       preferred_element_type=jnp.float32) + bo_ref[...]
        x1 = x + proj                                      # dropout == identity

        # Sublayer 2: LayerNorm2 + position-wise feed-forward on this q tile.
        xn2 = _layernorm(x1, ln2a_ref[...], ln2b_ref[...], eps)
        hid = jnp.dot(xn2.astype(w1_ref.dtype), w1_ref[...],
                      preferred_element_type=jnp.float32) + b1_ref[...]
        hid = jnp.maximum(hid, 0.0)
        ff = jnp.dot(hid.astype(w2_ref.dtype), w2_ref[...],
                     preferred_element_type=jnp.float32) + b2_ref[...]
        # TODO(synk): at production DFF (e.g. 4096) on v7x (64 MiB VMEM), tile
        # the FFN over DFF (extra grid axis / emit_pipeline) instead of keeping
        # the full w1/w2 resident in VMEM.
        o_ref[0] = (x1 + ff).astype(o_ref.dtype)


# --------------------------------- wrapper -----------------------------------
def encoder_layer(x, mask, params, *, num_heads, eps=1e-6, approx_recip=True):
    B, S, D = x.shape
    assert D % num_heads == 0
    Dh = D // num_heads

    T = _pick_seq_tile(S, B)
    TR = TQ = TK = T
    n_r, n_q, n_k = S // TR, S // TQ, S // TK

    vmem_limit = _default_vmem_limit()

    # int8 mask: 4x less HBM traffic than f32 (positions with mask==0 are masked).
    mask_i8 = (mask != 0).astype(jnp.int8)

    def const_spec(arr):
        nd = arr.ndim
        return pl.BlockSpec(arr.shape, lambda *_, _n=nd: (0,) * _n)

    # Fused QKV weight/bias: one [D, 3D] matmul instead of three [D, D] ones.
    wqkv = jnp.concatenate([params["wq"], params["wk"], params["wv"]], axis=1)
    bqkv = jnp.concatenate([params["bq"], params["bk"], params["bv"]], axis=1)

    # ----- kernel 1: LayerNorm1 + fused QKV projection (lane-dense q/k/v) ----
    qkv_params = (wqkv, bqkv, params["ln1_a"], params["ln1_b"])
    seq_shape = jax.ShapeDtypeStruct((B, S, D), x.dtype)
    seq_spec = pl.BlockSpec((1, TR, D), lambda b, r: (b, r, 0))
    q, k, v = pl.pallas_call(
        functools.partial(_qkv_kernel, num_heads=num_heads, eps=eps),
        out_shape=(seq_shape, seq_shape, seq_shape),
        grid=(B, n_r),
        in_specs=[seq_spec] + [const_spec(p) for p in qkv_params],
        out_specs=(seq_spec, seq_spec, seq_spec),
        compiler_params=pltpu.CompilerParams(
            dimension_semantics=("parallel", "parallel"),
            vmem_limit_bytes=vmem_limit),
    )(x, *qkv_params)

    # ----- kernel 2: flash attention + residual + LN2 + FFN + residual -------
    attn_params = [params[kk] for kk in
                   ("wo", "bo", "w1", "b1", "w2", "b2", "ln2_a", "ln2_b")]
    in_specs = [
        pl.BlockSpec((1, TQ, D), lambda b, qi, ki: (b, qi, 0)),    # x
        pl.BlockSpec((1, TQ, D), lambda b, qi, ki: (b, qi, 0)),    # q
        pl.BlockSpec((1, TK, D), lambda b, qi, ki: (b, ki, 0)),    # k
        pl.BlockSpec((1, TK, D), lambda b, qi, ki: (b, ki, 0)),    # v
        pl.BlockSpec((1, TQ, TK), lambda b, qi, ki: (b, qi, ki)),  # mask (int8)
    ] + [const_spec(p) for p in attn_params]

    return pl.pallas_call(
        functools.partial(_attn_ffn_kernel, num_heads=num_heads, eps=eps,
                          approx=approx_recip),
        out_shape=jax.ShapeDtypeStruct((B, S, D), x.dtype),
        grid=(B, n_q, n_k),
        in_specs=in_specs,
        out_specs=pl.BlockSpec((1, TQ, D), lambda b, qi, ki: (b, qi, 0)),
        scratch_shapes=[
            pltpu.VMEM((num_heads, TQ, 1), jnp.float32),    # running max
            pltpu.VMEM((num_heads, TQ, 1), jnp.float32),    # running denom
            pltpu.VMEM((num_heads, TQ, Dh), jnp.float32),   # per-head accumulator
        ],
        compiler_params=pltpu.CompilerParams(
            dimension_semantics=("parallel", "parallel", "arbitrary"),
            vmem_limit_bytes=vmem_limit),
    )(x, q, k, v, mask_i8, *attn_params)


# ----------------------------- pure-JAX reference ----------------------------
def encoder_layer_ref(x, mask, params, *, num_heads, eps=1e-6):
    B, S, D = x.shape
    Dh = D // num_heads

    def ln(z, a, b):
        m = jnp.mean(z, axis=-1, keepdims=True)
        s = jnp.sqrt(jnp.sum((z - m) ** 2, axis=-1, keepdims=True) / (D - 1))
        return a * (z - m) / (s + eps) + b

    xn = ln(x, params["ln1_a"], params["ln1_b"])
    q = xn @ params["wq"] + params["bq"]
    k = xn @ params["wk"] + params["bk"]
    v = xn @ params["wv"] + params["bv"]
    q = q.reshape(B, S, num_heads, Dh).transpose(0, 2, 1, 3)
    k = k.reshape(B, S, num_heads, Dh).transpose(0, 2, 1, 3)
    v = v.reshape(B, S, num_heads, Dh).transpose(0, 2, 1, 3)
    scores = jnp.einsum("bhqd,bhkd->bhqk", q, k) / math.sqrt(Dh)
    scores = jnp.where(mask[:, None, :, :] == 0, -1e9, scores)
    p = jax.nn.softmax(scores, axis=-1)
    attn = jnp.einsum("bhqk,bhkd->bhqd", p, v).transpose(0, 2, 1, 3).reshape(B, S, D)
    x1 = x + (attn @ params["wo"] + params["bo"])
    xn2 = ln(x1, params["ln2_a"], params["ln2_b"])
    ff = jnp.maximum(xn2 @ params["w1"] + params["b1"], 0.0) @ params["w2"] + params["b2"]
    return x1 + ff


if __name__ == "__main__":
    B, S, D, H, DFF = 2, 8, 32, 4, 64
    key = jax.random.PRNGKey(0)
    keys = jax.random.split(key, 8)

    x = jax.random.normal(keys[0], (B, S, D), dtype=jnp.float32)
    # Non-trivial (causal) mask to exercise the masking path.
    idx = jnp.arange(S)
    causal = (idx[:, None] >= idx[None, :]).astype(jnp.float32)
    mask = jnp.tile(causal[None], (B, 1, 1))

    def w(k, shape):
        return jax.random.normal(k, shape, dtype=jnp.float32) * 0.05

    params = {
        "wq": w(keys[1], (D, D)),   "bq": jnp.zeros((1, D), jnp.float32),
        "wk": w(keys[2], (D, D)),   "bk": jnp.zeros((1, D), jnp.float32),
        "wv": w(keys[3], (D, D)),   "bv": jnp.zeros((1, D), jnp.float32),
        "wo": w(keys[4], (D, D)),   "bo": jnp.zeros((1, D), jnp.float32),
        "w1": w(keys[5], (D, DFF)), "b1": jnp.zeros((1, DFF), jnp.float32),
        "w2": w(keys[6], (DFF, D)), "b2": jnp.zeros((1, D), jnp.float32),
        "ln1_a": jnp.ones((1, D), jnp.float32), "ln1_b": jnp.zeros((1, D), jnp.float32),
        "ln2_a": jnp.ones((1, D), jnp.float32), "ln2_b": jnp.zeros((1, D), jnp.float32),
    }

    ref = encoder_layer_ref(x, mask, params, num_heads=H)

    # 1) Exact-reciprocal path: tight correctness check vs the f32 reference.
    out_exact = jax.block_until_ready(
        encoder_layer(x, mask, params, num_heads=H, approx_recip=False))
    assert out_exact.shape == (B, S, D)
    assert jnp.allclose(out_exact, ref, atol=1e-4, rtol=1e-4), \
        float(jnp.max(jnp.abs(out_exact - ref)))

    # 2) Fast path: EUP approx reciprocal applies to the softmax denominator
    #    only (LayerNorm stays exact), so the tolerance stays tight-ish.
    out_fast = jax.block_until_ready(
        encoder_layer(x, mask, params, num_heads=H, approx_recip=True))
    assert jnp.allclose(out_fast, ref, atol=2e-2, rtol=2e-2), \
        float(jnp.max(jnp.abs(out_fast - ref)))

    # TODO(synk): dropout layers are treated as identity (inference mode);
    # stochastic dropout could be added with pltpu.prng_* for training semantics.
    print("KERNEL_OK")
</pallas_src>

<mosaic_0001>
module attributes {stable_mosaic.version = 11 : i64} {
  func.func @_qkv_kernel(%arg0: i32, %arg1: i32, %arg2: memref<1x8x32xf32, #tpu.memory_space<vmem>>, %arg3: memref<32x96xf32, #tpu.memory_space<vmem>>, %arg4: memref<1x96xf32, #tpu.memory_space<vmem>>, %arg5: memref<1x32xf32, #tpu.memory_space<vmem>>, %arg6: memref<1x32xf32, #tpu.memory_space<vmem>>, %arg7: memref<1x8x32xf32, #tpu.memory_space<vmem>>, %arg8: memref<1x8x32xf32, #tpu.memory_space<vmem>>, %arg9: memref<1x8x32xf32, #tpu.memory_space<vmem>>) attributes {dimension_semantics = [#tpu.dimension_semantics<parallel>, #tpu.dimension_semantics<parallel>], iteration_bounds = array<i64: 2, 1>, scalar_prefetch = 0 : i64, scratch_operands = 0 : i64, tpu.core_type = #tpu.core_type<tc>, window_params = [{transform_indices = @transform_0, window_bounds = array<i64: 1, 8, 32>}, {pipeline_mode = #tpu.pipeline_mode<synchronous>, transform_indices = @transform_1, window_bounds = array<i64: 32, 96>}, {pipeline_mode = #tpu.pipeline_mode<synchronous>, transform_indices = @transform_2, window_bounds = array<i64: 1, 96>}, {pipeline_mode = #tpu.pipeline_mode<synchronous>, transform_indices = @transform_3, window_bounds = array<i64: 1, 32>}, {pipeline_mode = #tpu.pipeline_mode<synchronous>, transform_indices = @transform_4, window_bounds = array<i64: 1, 32>}, {transform_indices = @transform_5, window_bounds = array<i64: 1, 8, 32>}, {transform_indices = @transform_6, window_bounds = array<i64: 1, 8, 32>}, {transform_indices = @transform_7, window_bounds = array<i64: 1, 8, 32>}]} {
    %c0 = arith.constant 0 : index
    %c0_0 = arith.constant 0 : index
    %c0_1 = arith.constant 0 : index
    %0 = vector.load %arg2[%c0, %c0_0, %c0_1] : memref<1x8x32xf32, #tpu.memory_space<vmem>>, vector<1x8x32xf32>
    %1 = vector.shape_cast %0 : vector<1x8x32xf32> to vector<8x32xf32>
    %c0_2 = arith.constant 0 : index
    %c0_3 = arith.constant 0 : index
    %2 = vector.load %arg5[%c0_2, %c0_3] : memref<1x32xf32, #tpu.memory_space<vmem>>, vector<1x32xf32>
    %c0_4 = arith.constant 0 : index
    %c0_5 = arith.constant 0 : index
    %3 = vector.load %arg6[%c0_4, %c0_5] : memref<1x32xf32, #tpu.memory_space<vmem>>, vector<1x32xf32>
    %cst = arith.constant dense<0.000000e+00> : vector<8xf32>
    %4 = vector.multi_reduction <add>, %1, %cst [1] : vector<8x32xf32> to vector<8xf32>
    %5 = vector.shape_cast %4 : vector<8xf32> to vector<8x1xf32>
    %cst_6 = arith.constant 3.200000e+01 : f32
    %6 = vector.broadcast %cst_6 : f32 to vector<8x1xf32>
    %7 = arith.divf %5, %6 : vector<8x1xf32>
    %8 = vector.broadcast %7 : vector<8x1xf32> to vector<8x32xf32>
    %9 = arith.subf %1, %8 : vector<8x32xf32>
    %10 = arith.mulf %9, %9 : vector<8x32xf32>
    %cst_7 = arith.constant dense<0.000000e+00> : vector<8xf32>
    %11 = vector.multi_reduction <add>, %10, %cst_7 [1] : vector<8x32xf32> to vector<8xf32>
    %12 = vector.shape_cast %11 : vector<8xf32> to vector<8x1xf32>
    %cst_8 = arith.constant 0.0322580636 : f32
    %13 = vector.broadcast %cst_8 : f32 to vector<8x1xf32>
    %14 = arith.mulf %12, %13 : vector<8x1xf32>
    %15 = vector.broadcast %2 : vector<1x32xf32> to vector<8x32xf32>
    %16 = arith.mulf %15, %9 : vector<8x32xf32>
    %17 = math.sqrt %14 : vector<8x1xf32>
    %cst_9 = arith.constant 9.99999997E-7 : f32
    %18 = vector.broadcast %cst_9 : f32 to vector<8x1xf32>
    %19 = arith.addf %17, %18 : vector<8x1xf32>
    %20 = vector.broadcast %19 : vector<8x1xf32> to vector<8x32xf32>
    %21 = arith.divf %16, %20 : vector<8x32xf32>
    %22 = vector.broadcast %3 : vector<1x32xf32> to vector<8x32xf32>
    %23 = arith.addf %21, %22 : vector<8x32xf32>
    %c0_10 = arith.constant 0 : index
    %c0_11 = arith.constant 0 : index
    %24 = vector.load %arg3[%c0_10, %c0_11] : memref<32x96xf32, #tpu.memory_space<vmem>>, vector<32x96xf32>
    %cst_12 = arith.constant dense<0.000000e+00> : vector<8x96xf32>
    %25 = tpu.matmul %23, %24, %cst_12 {dimension_numbers = #tpu.dot_dimension_numbers<[1], [0], [0], [1], [0, 0, 1, 1], [], []>} : vector<8x32xf32>, vector<32x96xf32>, vector<8x96xf32> -> vector<8x96xf32>
    %c0_13 = arith.constant 0 : index
    %c0_14 = arith.constant 0 : index
    %26 = vector.load %arg4[%c0_13, %c0_14] : memref<1x96xf32, #tpu.memory_space<vmem>>, vector<1x96xf32>
    %27 = vector.broadcast %26 : vector<1x96xf32> to vector<8x96xf32>
    %28 = arith.addf %25, %27 : vector<8x96xf32>
    %29 = vector.extract_strided_slice %28 {offsets = [0, 0], sizes = [8, 32], strides = [1, 1]} : vector<8x96xf32> to vector<8x32xf32>
    %cst_15 = arith.constant 0.353553385 : f32
    %30 = vector.broadcast %cst_15 : f32 to vector<8x32xf32>
    %31 = arith.mulf %29, %30 : vector<8x32xf32>
    %c0_16 = arith.constant 0 : index
    %c0_17 = arith.constant 0 : index
    %c0_18 = arith.constant 0 : index
    %32 = vector.load %arg7[%c0_16, %c0_17, %c0_18] : memref<1x8x32xf32, #tpu.memory_space<vmem>>, vector<1x8x32xf32>
    %33 = vector.shape_cast %32 : vector<1x8x32xf32> to vector<8x32xf32>
    %34 = vector.shape_cast %31 : vector<8x32xf32> to vector<1x8x32xf32>
    tpu.vector_store %arg7[%c0_16, %c0_17, %c0_18], %34 {strides = array<i32>} : memref<1x8x32xf32, #tpu.memory_space<vmem>>, vector<1x8x32xf32>,
    %35 = vector.extract_strided_slice %28 {offsets = [0, 32], sizes = [8, 32], strides = [1, 1]} : vector<8x96xf32> to vector<8x32xf32>
    %c0_19 = arith.constant 0 : index
    %c0_20 = arith.constant 0 : index
    %c0_21 = arith.constant 0 : index
    %36 = vector.load %arg8[%c0_19, %c0_20, %c0_21] : memref<1x8x32xf32, #tpu.memory_space<vmem>>, vector<1x8x32xf32>
    %37 = vector.shape_cast %36 : vector<1x8x32xf32> to vector<8x32xf32>
    %38 = vector.shape_cast %35 : vector<8x32xf32> to vector<1x8x32xf32>
    tpu.vector_store %arg8[%c0_19, %c0_20, %c0_21], %38 {strides = array<i32>} : memref<1x8x32xf32, #tpu.memory_space<vmem>>, vector<1x8x32xf32>,
    %39 = vector.extract_strided_slice %28 {offsets = [0, 64], sizes = [8, 32], strides = [1, 1]} : vector<8x96xf32> to vector<8x32xf32>
    %c0_22 = arith.constant 0 : index
    %c0_23 = arith.constant 0 : index
    %c0_24 = arith.constant 0 : index
    %40 = vector.load %arg9[%c0_22, %c0_23, %c0_24] : memref<1x8x32xf32, #tpu.memory_space<vmem>>, vector<1x8x32xf32>
    %41 = vector.shape_cast %40 : vector<1x8x32xf32> to vector<8x32xf32>
    %42 = vector.shape_cast %39 : vector<8x32xf32> to vector<1x8x32xf32>
    tpu.vector_store %arg9[%c0_22, %c0_23, %c0_24], %42 {strides = array<i32>} : memref<1x8x32xf32, #tpu.memory_space<vmem>>, vector<1x8x32xf32>,
    return
  }
  func.func @transform_0(%arg0: i32, %arg1: i32) -> (i32, i32, i32) {
    %c0_i32 = arith.constant 0 : i32
    %c0_i32_0 = arith.constant 0 : i32
    return %arg0, %arg1, %c0_i32 : i32, i32, i32
  }
  func.func @transform_1(%arg0: i32, %arg1: i32) -> (i32, i32) {
    %c0_i32 = arith.constant 0 : i32
    %c0_i32_0 = arith.constant 0 : i32
    %c0_i32_1 = arith.constant 0 : i32
    return %c0_i32, %c0_i32_0 : i32, i32
  }
  func.func @transform_2(%arg0: i32, %arg1: i32) -> (i32, i32) {
    %c0_i32 = arith.constant 0 : i32
    %c0_i32_0 = arith.constant 0 : i32
    %c0_i32_1 = arith.constant 0 : i32
    return %c0_i32, %c0_i32_0 : i32, i32
  }
  func.func @transform_3(%arg0: i32, %arg1: i32) -> (i32, i32) {
    %c0_i32 = arith.constant 0 : i32
    %c0_i32_0 = arith.constant 0 : i32
    %c0_i32_1 = arith.constant 0 : i32
    return %c0_i32, %c0_i32_0 : i32, i32
  }
  func.func @transform_4(%arg0: i32, %arg1: i32) -> (i32, i32) {
    %c0_i32 = arith.constant 0 : i32
    %c0_i32_0 = arith.constant 0 : i32
    %c0_i32_1 = arith.constant 0 : i32
    return %c0_i32, %c0_i32_0 : i32, i32
  }
  func.func @transform_5(%arg0: i32, %arg1: i32) -> (i32, i32, i32) {
    %c0_i32 = arith.constant 0 : i32
    %c0_i32_0 = arith.constant 0 : i32
    return %arg0, %arg1, %c0_i32 : i32, i32, i32
  }
  func.func @transform_6(%arg0: i32, %arg1: i32) -> (i32, i32, i32) {
    %c0_i32 = arith.constant 0 : i32
    %c0_i32_0 = arith.constant 0 : i32
    return %arg0, %arg1, %c0_i32 : i32, i32, i32
  }
  func.func @transform_7(%arg0: i32, %arg1: i32) -> (i32, i32, i32) {
    %c0_i32 = arith.constant 0 : i32
    %c0_i32_0 = arith.constant 0 : i32
    return %arg0, %arg1, %c0_i32 : i32, i32, i32
  }
}

</mosaic_0001>

<llo_original>
// kernel: tpu_custom_call.1
$region0: #{tpu_custom_call.1}
  #allocation0 [shape = 'u32[]', space=smem, size = 0x4, offset = 0x4, fixed_abs, tag = 'smem constant byte address 0x4 - core index']
  #allocation1 [shape = 'u32[72,128]{1,0:T(1,128)}', space=vmem, size = 0x9000, scoped, tag = 'internal scratch']
  %s0 = inlined_call_operand.hbm [shape: f32[2,8,32], index: 0, kind: input, shape index: {}]
  %s1 = inlined_call_operand.hbm [shape: f32[32,96], index: 1, kind: input, shape index: {}]
  %s2 = inlined_call_operand.vmem [shape: f32[1,96], index: 2, kind: input, shape index: {}]
  %s3 = inlined_call_operand.vmem [shape: f32[1,32], index: 3, kind: input, shape index: {}]
  %s4 = inlined_call_operand.vmem [shape: f32[1,32], index: 4, kind: input, shape index: {}]
  %s5 = inlined_call_operand.hbm [shape: f32[2,8,32], index: 5, kind: output, shape index: {0}]
  %s6 = inlined_call_operand.hbm [shape: f32[2,8,32], index: 6, kind: output, shape index: {1}]
  %s7 = inlined_call_operand.hbm [shape: f32[2,8,32], index: 7, kind: output, shape index: {2}]
  %8 = xla_tuple %s5, %s6, %s7
  %s9 = sld [smem:[#allocation0]]
  $region77: #{tpu_custom_call.1} parent=0
    _
  %s11 = ssub.s32 1, %s9
  %s12 = scalar_select 0, %s11, %s9
  $region1: #{tpu_custom_call.1} parent=0
    #allocation2 [shape = 'u8[8192]{0}', space=vmem, size = 0x2000, scoped, tag = 'input window, operand 0']
    #allocation3 [shape = 's32[2]{0}', space=sflag, size = 0x8, scoped, tag = 'scoped memory for tpu_custom_call.1']
    #allocation4 [shape = 's32[2]{0}', space=sflag, size = 0x8, scoped, tag = 'scoped memory for tpu_custom_call.1']
    #allocation5 [shape = 'u8[16384]{0}', space=vmem, size = 0x4000, scoped, tag = 'input window, operand 1, single buffered']
    #allocation6 [shape = 's32[1]{0}', space=sflag, size = 0x4, scoped, tag = 'scoped memory for tpu_custom_call.1']
    #allocation7 [shape = 'u8[8192]{0}', space=vmem, size = 0x2000, scoped, tag = 'output window, operand 0']
    #allocation8 [shape = 'u8[8192]{0}', space=vmem, size = 0x2000, scoped, tag = 'output window, operand 1']
    #allocation9 [shape = 's32[2]{0}', space=sflag, size = 0x8, scoped, tag = 'scoped memory for tpu_custom_call.1']
    #allocation10 [shape = 'u8[8192]{0}', space=vmem, size = 0x2000, scoped, tag = 'output window, operand 2']
    %13 = vsyncpa [#allocation3], 0
    %s14 = scalar_lea.sflag [#allocation3], 1
    %15 = vsyncpa %s14, 0
    %16 = vsyncpa [#allocation6], 0
    %17 = vsyncpa [#allocation4], 0
    %s18 = scalar_lea.sflag [#allocation4], 1
    %19 = vsyncpa %s18, 0
    %20 = vsyncpa [#allocation9], 0
    %s21 = scalar_lea.sflag [#allocation9], 1
    %22 = vsyncpa %s21, 0
    loop: start=0, step=1, limit=4
    $region2: #{tpu_custom_call.1} parent=1 // loop_pre_header
      _
    $region3: #{tpu_custom_call.1} parent=1 // loop_header
      %s24 = sphi 0, %s28
      %p25 = scmp.ge.s32.totalorder %s24, 4
      %s31 = sphi 0, %s43
      %s32 = sphi 0, %s39
      %s33 = sphi 0, %s31
      %s34 = sphi 0, %s32
      %s35 = sphi 0, %s33
      %s36 = sphi 0, %s34
      %s48 = sphi 0, %s50
      %s51 = sphi 0, %s48
      %s52 = sphi 0, %s51
      %s68 = sphi 0, %s52
      %s72 = sphi 0, %s72
      %s74 = sphi 0, %s72
      %s75 = sphi 0, %s74
      %s89 = sphi 0, %s75
      %s93 = sphi 0, %s93
      %s95 = sphi 0, %s93
      %s96 = sphi 0, %s95
      %s110 = sphi 0, %s96
      %s114 = sphi 0, %s114
      %s116 = sphi 0, %s114
      %s117 = sphi 0, %s116
      %s131 = sphi 0, %s117
      %s135 = sphi 0, %s135
      %s137 = sphi 0, %s135
      %s138 = sphi 0, %s137
      %s152 = sphi 0, %s138
      %s160 = sphi 0, %s162
      %s163 = sphi 0, %s160
      %s164 = sphi 0, %s163
      %s180 = sphi 0, %s164
      %s188 = sphi 0, %s190
      %s191 = sphi 0, %s188
      %s192 = sphi 0, %s191
      %s208 = sphi 0, %s192
      %s216 = sphi 0, %s218
      %s219 = sphi 0, %s216
      %s220 = sphi 0, %s219
      %s236 = sphi 0, %s220
    $region4: #{tpu_custom_call.1} parent=1 // loop_header_branch
      %27 = sbr.rel (%p25) target = $region8
    $region5: #{tpu_custom_call.1} parent=1 // loop_body
      %s29 = ssub.s32 %s24, 1
      %s30 = ssub.s32 %s24, 2
      %s37 = sadd.s32 1, %s32
      %p38 = scmp.ge.s32.totalorder %s37, 1
      %s39 = scalar_select %p38, 0, %s37
      %s40 = sadd.s32 1, %s31
      %s41 = scalar_select %p38, %s40, %s31
      %p42 = scmp.ge.s32.totalorder %s41, 2
      %s43 = scalar_select %p42, 0, %s41
      %s44 = ssub.s32 %s31, %s43
      %s45 = ssub.s32 %s32, %s39
      %s46 = sor.u32 %s44, %s45
      %p47 = scmp.eq.s32.totalorder %s46, 0
      %s49 = sadd.s32 %s48, 1
      %s50 = scalar_select %p47, %s48, %s49
      %p53 = pneg %p47
      %p54 = scmp.eq.s32.totalorder %s24, 1
      %p55 = por %p53, %p54
      %p56 = scmp.ne.s32.totalorder %s48, %s51
      %p57 = scmp.eq.s32.totalorder %s24, 0
      %p58 = por %p56, %p57
      %p59 = scmp.ne.s32.totalorder %s48, %s51
      %p60 = scmp.eq.s32.totalorder %s29, 1
      %p61 = por %p59, %p60
      %p62 = scmp.ne.s32.totalorder %s51, %s52
      %p63 = scmp.eq.s32.totalorder %s29, 0
      %p64 = por %p62, %p63
      %p65 = scmp.ne.s32.totalorder %s51, %s52
      %p66 = scmp.eq.s32.totalorder %s30, 1
      %p67 = por %p65, %p66
      %p69 = scmp.ne.s32.totalorder %s52, %s68
      %p70 = scmp.eq.s32.totalorder %s30, 0
      %p71 = por %p69, %p70
      %s73 = sadd.s32 %s72, 1
      %p76 = scmp.eq.s32.totalorder %s24, 1
      %p77 = scmp.ne.s32.totalorder %s72, %s74
      %p78 = scmp.eq.s32.totalorder %s24, 0
      %p79 = por %p77, %p78
      %p80 = scmp.ne.s32.totalorder %s72, %s74
      %p81 = scmp.eq.s32.totalorder %s29, 1
      %p82 = por %p80, %p81
      %p83 = scmp.ne.s32.totalorder %s74, %s75
      %p84 = scmp.eq.s32.totalorder %s29, 0
      %p85 = por %p83, %p84
      %p86 = scmp.ne.s32.totalorder %s74, %s75
      %p87 = scmp.eq.s32.totalorder %s30, 1
      %p88 = por %p86, %p87
      %p90 = scmp.ne.s32.totalorder %s75, %s89
      %p91 = scmp.eq.s32.totalorder %s30, 0
      %p92 = por %p90, %p91
      %s94 = sadd.s32 %s93, 1
      %p97 = scmp.eq.s32.totalorder %s24, 1
      %p98 = scmp.ne.s32.totalorder %s93, %s95
      %p99 = scmp.eq.s32.totalorder %s24, 0
      %p100 = por %p98, %p99
      %p101 = scmp.ne.s32.totalorder %s93, %s95
      %p102 = scmp.eq.s32.totalorder %s29, 1
      %p103 = por %p101, %p102
      %p104 = scmp.ne.s32.totalorder %s95, %s96
      %p105 = scmp.eq.s32.totalorder %s29, 0
      %p106 = por %p104, %p105
      %p107 = scmp.ne.s32.totalorder %s95, %s96
      %p108 = scmp.eq.s32.totalorder %s30, 1
      %p109 = por %p107, %p108
      %p111 = scmp.ne.s32.totalorder %s96, %s110
      %p112 = scmp.eq.s32.totalorder %s30, 0
      %p113 = por %p111, %p112
      %s115 = sadd.s32 %s114, 1
      %p118 = scmp.eq.s32.totalorder %s24, 1
      %p119 = scmp.ne.s32.totalorder %s114, %s116
      %p120 = scmp.eq.s32.totalorder %s24, 0
      %p121 = por %p119, %p120
      %p122 = scmp.ne.s32.totalorder %s114, %s116
      %p123 = scmp.eq.s32.totalorder %s29, 1
      %p124 = por %p122, %p123
      %p125 = scmp.ne.s32.totalorder %s116, %s117
      %p126 = scmp.eq.s32.totalorder %s29, 0
      %p127 = por %p125, %p126
      %p128 = scmp.ne.s32.totalorder %s116, %s117
      %p129 = scmp.eq.s32.totalorder %s30, 1
      %p130 = por %p128, %p129
      %p132 = scmp.ne.s32.totalorder %s117, %s131
      %p133 = scmp.eq.s32.totalorder %s30, 0
      %p134 = por %p132, %p133
      %s136 = sadd.s32 %s135, 1
      %p139 = scmp.eq.s32.totalorder %s24, 1
      %p140 = scmp.ne.s32.totalorder %s135, %s137
      %p141 = scmp.eq.s32.totalorder %s24, 0
      %p142 = por %p140, %p141
      %p143 = scmp.ne.s32.totalorder %s135, %s137
      %p144 = scmp.eq.s32.totalorder %s29, 1
      %p145 = por %p143, %p144
      %p146 = scmp.ne.s32.totalorder %s137, %s138
      %p147 = scmp.eq.s32.totalorder %s29, 0
      %p148 = por %p146, %p147
      %p149 = scmp.ne.s32.totalorder %s137, %s138
      %p150 = scmp.eq.s32.totalorder %s30, 1
      %p151 = por %p149, %p150
      %p153 = scmp.ne.s32.totalorder %s138, %s152
      %p154 = scmp.eq.s32.totalorder %s30, 0
      %p155 = por %p153, %p154
      %s156 = ssub.s32 %s31, %s43
      %s157 = ssub.s32 %s32, %s39
      %s158 = sor.u32 %s156, %s157
      %p159 = scmp.eq.s32.totalorder %s158, 0
      %s161 = sadd.s32 %s160, 1
      %s162 = scalar_select %p159, %s160, %s161
      %p165 = pneg %p159
      %p166 = scmp.eq.s32.totalorder %s24, 1
      %p167 = por %p165, %p166
      %p168 = scmp.ne.s32.totalorder %s160, %s163
      %p169 = scmp.eq.s32.totalorder %s24, 0
      %p170 = por %p168, %p169
      %p171 = scmp.ne.s32.totalorder %s160, %s163
      %p172 = scmp.eq.s32.totalorder %s29, 1
      %p173 = por %p171, %p172
      %p174 = scmp.ne.s32.totalorder %s163, %s164
      %p175 = scmp.eq.s32.totalorder %s29, 0
      %p176 = por %p174, %p175
      %p177 = scmp.ne.s32.totalorder %s163, %s164
      %p178 = scmp.eq.s32.totalorder %s30, 1
      %p179 = por %p177, %p178
      %p181 = scmp.ne.s32.totalorder %s164, %s180
      %p182 = scmp.eq.s32.totalorder %s30, 0
      %p183 = por %p181, %p182
      %s184 = ssub.s32 %s31, %s43
      %s185 = ssub.s32 %s32, %s39
      %s186 = sor.u32 %s184, %s185
      %p187 = scmp.eq.s32.totalorder %s186, 0
      %s189 = sadd.s32 %s188, 1
      %s190 = scalar_select %p187, %s188, %s189
      %p193 = pneg %p187
      %p194 = scmp.eq.s32.totalorder %s24, 1
      %p195 = por %p193, %p194
      %p196 = scmp.ne.s32.totalorder %s188, %s191
      %p197 = scmp.eq.s32.totalorder %s24, 0
      %p198 = por %p196, %p197
      %p199 = scmp.ne.s32.totalorder %s188, %s191
      %p200 = scmp.eq.s32.totalorder %s29, 1
      %p201 = por %p199, %p200
      %p202 = scmp.ne.s32.totalorder %s191, %s192
      %p203 = scmp.eq.s32.totalorder %s29, 0
      %p204 = por %p202, %p203
      %p205 = scmp.ne.s32.totalorder %s191, %s192
      %p206 = scmp.eq.s32.totalorder %s30, 1
      %p207 = por %p205, %p206
      %p209 = scmp.ne.s32.totalorder %s192, %s208
      %p210 = scmp.eq.s32.totalorder %s30, 0
      %p211 = por %p209, %p210
      %s212 = ssub.s32 %s31, %s43
      %s213 = ssub.s32 %s32, %s39
      %s214 = sor.u32 %s212, %s213
      %p215 = scmp.eq.s32.totalorder %s214, 0
      %s217 = sadd.s32 %s216, 1
      %s218 = scalar_select %p215, %s216, %s217
      %p221 = pneg %p215
      %p222 = scmp.eq.s32.totalorder %s24, 1
      %p223 = por %p221, %p222
      %p224 = scmp.ne.s32.totalorder %s216, %s219
      %p225 = scmp.eq.s32.totalorder %s24, 0
      %p226 = por %p224, %p225
      %p227 = scmp.ne.s32.totalorder %s216, %s219
      %p228 = scmp.eq.s32.totalorder %s29, 1
      %p229 = por %p227, %p228
      %p230 = scmp.ne.s32.totalorder %s219, %s220
      %p231 = scmp.eq.s32.totalorder %s29, 0
      %p232 = por %p230, %p231
      %p233 = scmp.ne.s32.totalorder %s219, %s220
      %p234 = scmp.eq.s32.totalorder %s30, 1
      %p235 = por %p233, %p234
      %p237 = scmp.ne.s32.totalorder %s220, %s236
      %p238 = scmp.eq.s32.totalorder %s30, 0
      %p239 = por %p237, %p238
      %p240 = scmp.le.s32.totalorder 1, %s24
      %p241 = scmp.lt.s32.totalorder %s24, 3
      %p242 = pnand %p240, %p241
      %p243 = pneg %p242
      // Predicated region
      $region9: #{tpu_custom_call.1} parent=5 // pred_check
        _
      $region10: #{tpu_custom_call.1} parent=5 // pred_check_branch
        %245 = sbr.rel (%p242) target = $region12
      $region11: #{tpu_custom_call.1} parent=5 // pred_region
        %s246 = ssub.s32 %s24, 1
        // Predicated region
        $region13: #{tpu_custom_call.1} parent=11 // pred_check
          %p247 = pneg %p85
        $region14: #{tpu_custom_call.1} parent=11 // pred_check_branch
          %249 = sbr.rel (%p247) target = $region16
        $region15: #{tpu_custom_call.1} parent=11 // pred_region
          %251 = vsyncadd [#allocation6], 0
          %s252 = sshll.u32 %s1, 4
          %s253 = int_to_ptr.hbm [resolvable:$true] %s252
          %s254 = sshll.u32 [#allocation5], 4
          %s255 = int_to_ptr.vmem [resolvable:$true] %s254
          %260 = dma.hbm_to_vmem [thread:$0]  %s253, 512, %s255, [#allocation6], 128, 128, 8
        $region16: #{tpu_custom_call.1} parent=11 // pred_fallthru
          _
        // Predicated region
        $region17: #{tpu_custom_call.1} parent=11 // pred_check
          %p261 = pneg %p106
        $region18: #{tpu_custom_call.1} parent=11 // pred_check_branch
          %263 = sbr.rel (%p261) target = $region20
        $region19: #{tpu_custom_call.1} parent=11 // pred_region
          _
        $region20: #{tpu_custom_call.1} parent=11 // pred_fallthru
          _
        // Predicated region
        $region21: #{tpu_custom_call.1} parent=11 // pred_check
          %p264 = pneg %p127
        $region22: #{tpu_custom_call.1} parent=11 // pred_check_branch
          %266 = sbr.rel (%p264) target = $region24
        $region23: #{tpu_custom_call.1} parent=11 // pred_region
          _
        $region24: #{tpu_custom_call.1} parent=11 // pred_fallthru
          _
        // Predicated region
        $region25: #{tpu_custom_call.1} parent=11 // pred_check
          %p267 = pneg %p148
        $region26: #{tpu_custom_call.1} parent=11 // pred_check_branch
          %269 = sbr.rel (%p267) target = $region28
        $region27: #{tpu_custom_call.1} parent=11 // pred_region
          _
        $region28: #{tpu_custom_call.1} parent=11 // pred_fallthru
          _
      $region12: #{tpu_custom_call.1} parent=5 // pred_fallthru
        _
      %p270 = scmp.lt.s32.totalorder %s24, 2
      // Predicated region
      $region29: #{tpu_custom_call.1} parent=5 // pred_check
        %p271 = pneg %p270
      $region30: #{tpu_custom_call.1} parent=5 // pred_check_branch
        %273 = sbr.rel (%p271) target = $region32
      $region31: #{tpu_custom_call.1} parent=5 // pred_region
        // Predicated region
        $region33: #{tpu_custom_call.1} parent=31 // pred_check
          %p274 = pneg %p58
        $region34: #{tpu_custom_call.1} parent=31 // pred_check_branch
          %276 = sbr.rel (%p274) target = $region36
        $region35: #{tpu_custom_call.1} parent=31 // pred_region
          %s277 = sand.u32 %s48, 1
          %s278 = scalar_lea.sflag [#allocation3], %s277
          %s279 = sand.u32 %s48, 1
          %s280 = smul.addr %s279, 8
          %s281 = scalar_lea.vmem [#allocation2], %s280
          %283 = vsyncadd %s278, 0
          %s284 = sadd.s32 %s32, %s31
          %s285 = smul.addr %s284, 8
          %s286 = scalar_lea.hbm %s0, %s285
          %s288 = sshll.u32 %s286, 4
          %s289 = int_to_ptr.hbm [resolvable:$true] %s288
          %s290 = sshll.u32 %s281, 4
          %s291 = int_to_ptr.vmem [resolvable:$true] %s290
          %293 = dma.hbm_to_vmem [thread:$0]  %s289, 128, %s291, %s278
        $region36: #{tpu_custom_call.1} parent=31 // pred_fallthru
          _
      $region32: #{tpu_custom_call.1} parent=5 // pred_fallthru
        _
      %p294 = scmp.le.s32.totalorder 1, %s24
      %p295 = scmp.lt.s32.totalorder %s24, 3
      %p296 = pnand %p294, %p295
      %p297 = pneg %p296
      // Predicated region
      $region37: #{tpu_custom_call.1} parent=5 // pred_check
        _
      $region38: #{tpu_custom_call.1} parent=5 // pred_check_branch
        %299 = sbr.rel (%p296) target = $region40
      $region39: #{tpu_custom_call.1} parent=5 // pred_region
        %s300 = ssub.s32 %s24, 1
        %s301 = sand.u32 %s51, 1
        %s302 = scalar_lea.sflag [#allocation3], %s301
        %s303 = sand.u32 %s51, 1
        %s304 = smul.addr %s303, 8
        %s305 = scalar_lea.vmem [#allocation2], %s304
        // Predicated region
        $region41: #{tpu_custom_call.1} parent=39 // pred_check
          %p306 = pneg %p64
        $region42: #{tpu_custom_call.1} parent=39 // pred_check_branch
          %308 = sbr.rel (%p306) target = $region44
        $region43: #{tpu_custom_call.1} parent=39 // pred_region
          %310 = dma.done %s302, 128
        $region44: #{tpu_custom_call.1} parent=39 // pred_fallthru
          _
        // Predicated region
        $region45: #{tpu_custom_call.1} parent=39 // pred_check
          %p311 = pneg %p85
        $region46: #{tpu_custom_call.1} parent=39 // pred_check_branch
          %313 = sbr.rel (%p311) target = $region48
        $region47: #{tpu_custom_call.1} parent=39 // pred_region
          %315 = dma.done [#allocation6], 512
        $region48: #{tpu_custom_call.1} parent=39 // pred_fallthru
          _
        %s316 = sand.u32 %s51, 1
        %s317 = scalar_lea.sflag [#allocation3], %s316
        %s318 = sand.u32 %s51, 1
        %s319 = smul.addr %s318, 8
        %s320 = scalar_lea.vmem [#allocation2], %s319
        %p321 = pneg %p64
        %p322 = pneg %p61
        %p323 = pneg %p85
        %p324 = pneg %p82
        %p325 = pneg %p106
        %p326 = pneg %p103
        %p327 = pneg %p127
        %p328 = pneg %p124
        %p329 = pneg %p148
        %p330 = pneg %p145
        %p331 = pneg %p176
        %p332 = pneg %p173
        %s333 = sand.u32 %s163, 1
        %s334 = scalar_lea.sflag [#allocation4], %s333
        %s335 = sand.u32 %s163, 1
        %s336 = smul.addr %s335, 8
        %s337 = scalar_lea.vmem [#allocation7], %s336
        %p338 = pneg %p204
        %p339 = pneg %p201
        %s340 = sand.u32 %s29, 1
        %s341 = scalar_lea.sflag [#allocation9], %s340
        %s342 = sand.u32 %s191, 1
        %s343 = smul.addr %s342, 8
        %s344 = scalar_lea.vmem [#allocation8], %s343
        %p345 = pneg %p232
        %p346 = pneg %p229
        %s347 = sand.u32 %s29, 1
        %s348 = scalar_lea.sflag [#allocation9], %s347
        %s349 = sand.u32 %s219, 1
        %s350 = smul.addr %s349, 8
        %s351 = scalar_lea.vmem [#allocation10], %s350
        %v352 = vld [vmem:[%s305] sm:$0xff]
        %v353 = vld [vmem:[%s3] sm:$0x1]
        %v354 = vld [vmem:[%s4] sm:$0x1]
        %vm355 = vcmask 261120
        %v356 = vsel %vm355, %v352, 0.0
        %357 = vadd.xlane.f32.xlu0 %v356
        %v358 = vpop.xlane.xlu0 %357
        %v359 = vrcp.pop 32.0
        %v360 = vmul.f32 32.0, %v359
        %v361 = vsub.f32 1.0, %v360
        %v362 = vmul.f32 %v359, %v361
        %v363 = vadd.f32 %v359, %v362
        %vm364 = vweird.f32 %v359
        %v365 = vsel %vm364, %v359, %v363
        %v366 = vmul.f32 %v358, %v365
        %v367 = vsub.f32 %v352, %v366
        %v368 = vmul.f32 %v367, %v367
        %v369 = vsel %vm355, %v368, 0.0
        %370 = vadd.xlane.f32.xlu0 %v369
        %v371 = vpop.xlane.xlu0 %370
        %v372 = vmul.f32 %v371, 0.032258064
        %v374 = vperm.slane %v353, 0
        %v376 = vmul.f32 %v374, %v367
        %v377 = vrsqrt.pop %v372
        %v378 = vmul.f32 %v377, %v372
        %v379 = vmul.f32 %v378, %v377
        %v380 = vmul.f32 0.5, %v379
        %v381 = vsub.f32 1.5, %v380
        %v382 = vmul.f32 %v377, %v381
        %v383 = vmul.f32 %v372, %v382
        %vm384 = vcmp.eq.f32.partialorder %v372, inf
        %v385 = vsel %vm384, %v372, %v383
        %vm386 = vcmp.eq.f32.partialorder %v372, 0.0
        %v387 = vand.u32 %v372, 2147483648
        %v388 = vsel %vm386, %v387, %v385
        %v389 = vadd.f32 %v388, 1e-06
        %v390 = vrcp.pop %v389
        %v391 = vmul.f32 %v389, %v390
        %v392 = vsub.f32 1.0, %v391
        %v393 = vmul.f32 %v390, %v392
        %v394 = vadd.f32 %v390, %v393
        %vm395 = vweird.f32 %v389
        %vm396 = vweird.f32 %v390
        %vm397 = vmor %vm395, %vm396
        %v398 = vsel %vm397, %v390, %v394
        %v399 = vand.u32 2147483647, %v389
        %vm400 = vcmp.eq.f32.partialorder %v399, 8.507059e+37
        %v401 = vand.u32 %v389, 2147483648
        %v402 = vor.u32 1.1754944e-38, %v401
        %v403 = vsel %vm400, %v402, %v398
        %v404 = vmul.f32 %v376, %v403
        %v406 = vperm.slane %v354, 0
        %v408 = vadd.f32 %v404, %v406
        %v409 = vld [vmem:[#allocation5] sm:$0xff]
        %v410 = vld [vmem:[#allocation5 + $0x8] sm:$0xff]
        %v411 = vld [vmem:[#allocation5 + $0x10] sm:$0xff]
        %v412 = vld [vmem:[#allocation5 + $0x18] sm:$0xff]
        %v413 = vld [vmem:[%s2] sm:$0x1]
        %v415 = vperm.slane %v413, 0
        %v418 = vsel %vm355, %v408, 0
        %420 = vmatpush.msra.mxu0 0.0
        %421 = vmatpush.msra.mxu0 0.0
        %422 = vmatpush.msra.mxu0 0.0
        %423 = vmatpush.msra.mxu0 0.0
        %424 = vmatpush.msra.mxu0 0.0
        %425 = vmatpush.msra.mxu0 0.0
        %426 = vmatpush.msra.mxu0 0.0
        %427 = vmatpush.msra.mxu0 0.0
        %428 = vmatpush.msra.mxu0 0.0
        %429 = vmatpush.msra.mxu0 0.0
        %430 = vmatpush.msra.mxu0 0.0
        %431 = vmatpush.msra.mxu0 0.0
        %432 = vmatpush.msra.mxu0 %v412
        %433 = vmatpush.msra.mxu0 %v411
        %434 = vmatpush.msra.mxu0 %v410
        %435 = vmatpush.msra.mxu0 %v409
        %436 = vmatmul.f32.gmra.mxu0 %v418
        %v437 = vpop.f32.mrf.mxu0
        %v438 = vadd.f32 %v415, %v437
        %439 = vdwg.mxu0
        %v440 = vmul.f32 %v438, 0.35355338
        %441 = vst.msk [vmem:[%s337] sm:$0xff] %vm355, %v440
        %443 = vrot.lane.b32.xlu0 %v438, 96
        %v444 = vpop.permute.xlu0 %443
        %446 = vst.msk [vmem:[%s344] sm:$0xff] %vm355, %v444
        %447 = vrot.lane.b32.xlu0 %v438, 64
        %v448 = vpop.permute.xlu0 %447
        %450 = vst.msk [vmem:[%s351] sm:$0xff] %vm355, %v448
        %s451 = sand.u32 %s163, 1
        %s452 = scalar_lea.sflag [#allocation4], %s451
        %s453 = sand.u32 %s163, 1
        %s454 = smul.addr %s453, 8
        %s455 = scalar_lea.vmem [#allocation7], %s454
        %s456 = sand.u32 %s29, 1
        %s457 = scalar_lea.sflag [#allocation9], %s456
        %s458 = sand.u32 %s191, 1
        %s459 = smul.addr %s458, 8
        %s460 = scalar_lea.vmem [#allocation8], %s459
        %s461 = sand.u32 %s29, 1
        %s462 = scalar_lea.sflag [#allocation9], %s461
        %s463 = sand.u32 %s219, 1
        %s464 = smul.addr %s463, 8
        %s465 = scalar_lea.vmem [#allocation10], %s464
        // Predicated region
        $region49: #{tpu_custom_call.1} parent=39 // pred_check
          %p466 = pneg %p173
        $region50: #{tpu_custom_call.1} parent=39 // pred_check_branch
          %468 = sbr.rel (%p466) target = $region52
        $region51: #{tpu_custom_call.1} parent=39 // pred_region
          %470 = vsyncadd %s452, 0
          %s471 = sadd.s32 %s34, %s33
          %s472 = smul.addr %s471, 8
          %s473 = scalar_lea.hbm %s5, %s472
          %s475 = sshll.u32 %s455, 4
          %s476 = int_to_ptr.vmem [resolvable:$true] %s475
          %s477 = sshll.u32 %s473, 4
          %s478 = int_to_ptr.hbm [resolvable:$true] %s477
          %480 = dma.vmem_to_hbm [thread:$0]  %s476, 128, %s478, %s452
        $region52: #{tpu_custom_call.1} parent=39 // pred_fallthru
          _
        // Predicated region
        $region53: #{tpu_custom_call.1} parent=39 // pred_check
          %p481 = pneg %p201
        $region54: #{tpu_custom_call.1} parent=39 // pred_check_branch
          %483 = sbr.rel (%p481) target = $region56
        $region55: #{tpu_custom_call.1} parent=39 // pred_region
          %485 = vsyncadd %s457, 0
          %s486 = sadd.s32 %s34, %s33
          %s487 = smul.addr %s486, 8
          %s488 = scalar_lea.hbm %s6, %s487
          %s490 = sshll.u32 %s460, 4
          %s491 = int_to_ptr.vmem [resolvable:$true] %s490
          %s492 = sshll.u32 %s488, 4
          %s493 = int_to_ptr.hbm [resolvable:$true] %s492
          %495 = dma.vmem_to_hbm [thread:$0]  %s491, 128, %s493, %s457
        $region56: #{tpu_custom_call.1} parent=39 // pred_fallthru
          _
        // Predicated region
        $region57: #{tpu_custom_call.1} parent=39 // pred_check
          %p496 = pneg %p229
        $region58: #{tpu_custom_call.1} parent=39 // pred_check_branch
          %498 = sbr.rel (%p496) target = $region60
        $region59: #{tpu_custom_call.1} parent=39 // pred_region
          %500 = vsyncadd %s462, 0
          %s501 = sadd.s32 %s34, %s33
          %s502 = smul.addr %s501, 8
          %s503 = scalar_lea.hbm %s7, %s502
          %s505 = sshll.u32 %s465, 4
          %s506 = int_to_ptr.vmem [resolvable:$true] %s505
          %s507 = sshll.u32 %s503, 4
          %s508 = int_to_ptr.hbm [resolvable:$true] %s507
          %510 = dma.vmem_to_hbm [thread:$0]  %s506, 128, %s508, %s462
        $region60: #{tpu_custom_call.1} parent=39 // pred_fallthru
          _
      $region40: #{tpu_custom_call.1} parent=5 // pred_fallthru
        _
      %p511 = scmp.le.s32.totalorder 2, %s24
      // Predicated region
      $region61: #{tpu_custom_call.1} parent=5 // pred_check
        %p512 = pneg %p511
      $region62: #{tpu_custom_call.1} parent=5 // pred_check_branch
        %514 = sbr.rel (%p512) target = $region64
      $region63: #{tpu_custom_call.1} parent=5 // pred_region
        %s515 = ssub.s32 %s24, 2
        // Predicated region
        $region65: #{tpu_custom_call.1} parent=63 // pred_check
          %p516 = pneg %p179
        $region66: #{tpu_custom_call.1} parent=63 // pred_check_branch
          %518 = sbr.rel (%p516) target = $region68
        $region67: #{tpu_custom_call.1} parent=63 // pred_region
          %s519 = sand.u32 %s164, 1
          %s520 = scalar_lea.sflag [#allocation4], %s519
          %s521 = sand.u32 %s164, 1
          %s522 = smul.addr %s521, 8
          %s523 = scalar_lea.vmem [#allocation7], %s522
          %525 = dma.done %s520, 128
        $region68: #{tpu_custom_call.1} parent=63 // pred_fallthru
          _
        // Predicated region
        $region69: #{tpu_custom_call.1} parent=63 // pred_check
          %p526 = pneg %p207
        $region70: #{tpu_custom_call.1} parent=63 // pred_check_branch
          %528 = sbr.rel (%p526) target = $region72
        $region71: #{tpu_custom_call.1} parent=63 // pred_region
          %s529 = sand.u32 %s30, 1
          %s530 = scalar_lea.sflag [#allocation9], %s529
          %s531 = sand.u32 %s192, 1
          %s532 = smul.addr %s531, 8
          %s533 = scalar_lea.vmem [#allocation8], %s532
          %535 = dma.done %s530, 128
        $region72: #{tpu_custom_call.1} parent=63 // pred_fallthru
          _
        // Predicated region
        $region73: #{tpu_custom_call.1} parent=63 // pred_check
          %p536 = pneg %p235
        $region74: #{tpu_custom_call.1} parent=63 // pred_check_branch
          %538 = sbr.rel (%p536) target = $region76
        $region75: #{tpu_custom_call.1} parent=63 // pred_region
          %s539 = sand.u32 %s30, 1
          %s540 = scalar_lea.sflag [#allocation9], %s539
          %s541 = sand.u32 %s220, 1
          %s542 = smul.addr %s541, 8
          %s543 = scalar_lea.vmem [#allocation10], %s542
          %545 = dma.done %s540, 128
        $region76: #{tpu_custom_call.1} parent=63 // pred_fallthru
          _
      $region64: #{tpu_custom_call.1} parent=5 // pred_fallthru
        _
    $region6: #{tpu_custom_call.1} parent=1 // loop_footer
      %s28 = sadd.s32 1, %s24
    $region7: #{tpu_custom_call.1} parent=1 // loop_footer_branch
      %23 = sbr.rel target = $region3
    $region8: #{tpu_custom_call.1} parent=1 // loop_exit
      _
    %546 = vsyncpa [#allocation3], 1
    %s547 = scalar_lea.sflag [#allocation3], 1
    %548 = vsyncpa %s547, 1
    %549 = vsyncpa [#allocation6], 1
    %550 = vsyncpa [#allocation4], 1
    %s551 = scalar_lea.sflag [#allocation4], 1
    %552 = vsyncpa %s551, 1
    %553 = vsyncpa [#allocation9], 1
    %s554 = scalar_lea.sflag [#allocation9], 1
    %555 = vsyncpa %s554, 1

</llo_original>
